<compile_context>
chip_gen: v7x
topology: tpu7x:2x2x1
jax: 0.10.0
libtpu: 0.0.40
codegen_flags: <defaults>
</compile_context>

<pallas_src>
import numpy as np
import jax
import jax.numpy as jnp
from jax.experimental import pallas as pl
from jax.experimental.pallas import tpu as pltpu

# Module hyper-parameters (standard MHA: num_key_value_heads == num_heads).
MODEL_DIM = 32
NUM_HEADS = 4
NUM_KV_HEADS = 4            # < NUM_HEADS would be GQA (handled via a wrapper-side repeat)
HEAD_DIM = MODEL_DIM // NUM_HEADS
KV_DIM = HEAD_DIM * NUM_KV_HEADS
GROUPS = NUM_HEADS // NUM_KV_HEADS

BATCH = 2
SEQ = 8
SEQ_KV = 8


def _pick_block(n, target):
    """Largest divisor of n that is <= target and a multiple of 8 (or n itself)."""
    if n <= target:
        return n
    for d in range(target, 0, -1):
        if n % d == 0 and d % 8 == 0:
            return d
    return n


# --------------------------- projection kernel (hoisted) ---------------------------

def _linear_kernel(x_ref, w_ref, b_ref, o_ref):
    o_ref[...] = (jnp.dot(x_ref[...], w_ref[...],
                          preferred_element_type=jnp.float32)
                  + b_ref[...]).astype(o_ref.dtype)


def _linear(x2, w_t, b2, *, row_block=512):
    """x2: (rows, d_in) @ w_t: (d_in, d_out) + b2: (1, d_out), row-blocked on one grid axis."""
    rows, d_in = x2.shape
    d_out = w_t.shape[1]
    rb = _pick_block(rows, row_block)
    return pl.pallas_call(
        _linear_kernel,
        out_shape=jax.ShapeDtypeStruct((rows, d_out), x2.dtype),
        grid_spec=pltpu.PrefetchScalarGridSpec(
            num_scalar_prefetch=0,
            grid=(rows // rb,),
            in_specs=[
                pl.BlockSpec((rb, d_in), lambda i: (i, 0)),
                pl.BlockSpec((d_in, d_out), lambda i: (0, 0)),
                pl.BlockSpec((1, d_out), lambda i: (0, 0)),
            ],
            out_specs=pl.BlockSpec((rb, d_out), lambda i: (i, 0)),
        ),
        compiler_params=pltpu.CompilerParams(
            dimension_semantics=("parallel",)),
    )(x2, w_t, b2)


# ------------------------- batch-local flash attention kernel -------------------------

def _attn_kernel(q_ref, k_ref, v_ref, wo3_ref, bo_ref, out_ref, m_sc, l_sc, acc_sc):
    kv = pl.program_id(2)

    @pl.when(kv == 0)
    def _():
        m_sc[...] = jnp.full(m_sc.shape, -jnp.inf, dtype=m_sc.dtype)
        l_sc[...] = jnp.zeros(l_sc.shape, dtype=l_sc.dtype)
        acc_sc[...] = jnp.zeros(acc_sc.shape, dtype=acc_sc.dtype)

    q = q_ref[0]          # (H, tq, hd) ; softmax scale pre-folded into the q projection
    k = k_ref[0]          # (H, tk, hd)
    v = v_ref[0]          # (H, tk, hd)

    # Head-batched score matmul: contract the last dims directly (no transpose).
    s = jnp.einsum('hqd,hkd->hqk', q, k,
                   preferred_element_type=jnp.float32)        # (H, tq, tk)
    # TODO(synk): add key_padding_mask / attn_mask here as an additive f32 bias
    #             (generate in-kernel with broadcasted_iota, do not stream from HBM).

    # Online (flash-style) softmax over the kv grid axis.
    m_prev = m_sc[...]                                        # (H, tq, 1)
    m_new = jnp.maximum(m_prev, jnp.max(s, axis=-1, keepdims=True))
    alpha = jnp.exp(m_prev - m_new)
    p = jnp.exp(s - m_new)                                    # (H, tq, tk)
    l_sc[...] = alpha * l_sc[...] + jnp.sum(p, axis=-1, keepdims=True)
    acc_sc[...] = alpha * acc_sc[...] + jnp.einsum(
        'hqk,hkd->hqd', p, v, preferred_element_type=jnp.float32)
    m_sc[...] = m_new

    @pl.when(kv == pl.num_programs(2) - 1)
    def _():
        inv_l = pl.reciprocal(l_sc[...], approx=True)         # (H, tq, 1), EUP slot
        ctx = acc_sc[...] * inv_l                             # (H, tq, hd)
        # Head merge fused into the output projection via the (H, hd, M) weight:
        # no ctx scratch, no lane-sliced stores; H MXU contractions over hd.
        out = jnp.dot(ctx[0], wo3_ref[0], preferred_element_type=jnp.float32)
        for h in range(1, NUM_HEADS):
            out = out + jnp.dot(ctx[h], wo3_ref[h], preferred_element_type=jnp.float32)
        out_ref[0] = (out + bo_ref[...]).astype(out_ref.dtype)


def multihead_attention(seqs, keys, values, kernel_params, *,
                        q_block=None, kv_block=None):
    """seqs: (N, S, M), keys/values: (N, S_kv, M) float32. Returns (N, S, M)."""
    wq_t, bq, wk_t, bk, wv_t, bv, wo3, bo = kernel_params
    n, s, m = seqs.shape
    s_kv = keys.shape[1]

    # ---- projections, hoisted out of the attention loops (each row projected once) ----
    q2 = _linear(seqs.reshape(n * s, m), wq_t, bq)            # (N*S,    M)
    k2 = _linear(keys.reshape(n * s_kv, m), wk_t, bk)         # (N*S_kv, KV_DIM)
    v2 = _linear(values.reshape(n * s_kv, m), wv_t, bv)       # (N*S_kv, KV_DIM)

    # Head-major layout (N, H, S, hd): wrapper-side layout plumbing so the attention
    # kernel's hot loop has zero per-iteration relayouts / transposes.
    # TODO(synk): fuse this transpose into the projection kernel's out_spec for
    #             production sizes to avoid one extra HBM pass.
    qh = q2.reshape(n, s, NUM_HEADS, HEAD_DIM).transpose(0, 2, 1, 3)
    kh = k2.reshape(n, s_kv, NUM_KV_HEADS, HEAD_DIM).transpose(0, 2, 1, 3)
    vh = v2.reshape(n, s_kv, NUM_KV_HEADS, HEAD_DIM).transpose(0, 2, 1, 3)
    if GROUPS > 1:
        # TODO(synk): GQA path (unused in this config) — replace with an in-kernel
        #             grouped contraction so K/V tiles are never physically duplicated.
        kh = jnp.repeat(kh, GROUPS, axis=1)
        vh = jnp.repeat(vh, GROUPS, axis=1)

    if q_block is None:
        q_block = _pick_block(s, 256)       # >=2 q blocks at production S => megacore
    if kv_block is None:
        kv_block = _pick_block(s_kv, 512)   # KV tiled: VMEM is O(kv_block), not O(S_kv)
    assert s % q_block == 0 and s_kv % kv_block == 0

    grid = (n, s // q_block, s_kv // kv_block)   # reduction (kv) axis last

    out = pl.pallas_call(
        _attn_kernel,
        out_shape=jax.ShapeDtypeStruct((n, s, m), seqs.dtype),
        grid_spec=pltpu.PrefetchScalarGridSpec(
            num_scalar_prefetch=0,
            grid=grid,
            in_specs=[
                pl.BlockSpec((1, NUM_HEADS, q_block, HEAD_DIM),
                             lambda b, i, j: (b, 0, i, 0)),
                pl.BlockSpec((1, NUM_HEADS, kv_block, HEAD_DIM),
                             lambda b, i, j: (b, 0, j, 0)),
                pl.BlockSpec((1, NUM_HEADS, kv_block, HEAD_DIM),
                             lambda b, i, j: (b, 0, j, 0)),
                pl.BlockSpec((NUM_HEADS, HEAD_DIM, m), lambda b, i, j: (0, 0, 0)),
                pl.BlockSpec((1, m), lambda b, i, j: (0, 0)),
            ],
            out_specs=pl.BlockSpec((1, q_block, m), lambda b, i, j: (b, i, 0)),
            scratch_shapes=[
                pltpu.VMEM((NUM_HEADS, q_block, 1), jnp.float32),        # running max
                pltpu.VMEM((NUM_HEADS, q_block, 1), jnp.float32),        # running sum
                pltpu.VMEM((NUM_HEADS, q_block, HEAD_DIM), jnp.float32),  # running ctx
            ],
        ),
        compiler_params=pltpu.CompilerParams(
            # batch and q-row axes are independent (megacore-splittable on v7x);
            # kv axis carries the online-softmax accumulators.
            dimension_semantics=("parallel", "parallel", "arbitrary"),
        ),
    )(qh, kh, vh, wo3, bo)

    return out


# ----------------------------- parameters & reference -----------------------------

def _xavier_uniform(key, shape_out_in, gain=1.0):
    # PyTorch nn.init.xavier_uniform_ on a Linear weight of shape (out, in)
    fan_out, fan_in = shape_out_in
    a = gain * float(np.sqrt(6.0 / (fan_in + fan_out)))
    return jax.random.uniform(key, shape_out_in, jnp.float32, -a, a)


def make_module_params(key):
    """PyTorch-layout params: Linear weights (out, in), biases (out,)."""
    k1, k2, k3, k4 = jax.random.split(key, 4)
    qkv_gain = 2.0 ** (-0.5)                                   # init_qkv_projection
    wq = _xavier_uniform(k1, (MODEL_DIM, MODEL_DIM), qkv_gain)
    wk = _xavier_uniform(k2, (KV_DIM, MODEL_DIM), qkv_gain)
    wv = _xavier_uniform(k3, (KV_DIM, MODEL_DIM), qkv_gain)
    wo = _xavier_uniform(k4, (MODEL_DIM, MODEL_DIM), 1.0)      # init_output_projection
    bq = jnp.zeros((MODEL_DIM,), jnp.float32)                  # biases zero-initialized
    bk = jnp.zeros((KV_DIM,), jnp.float32)
    bv = jnp.zeros((KV_DIM,), jnp.float32)
    bo = jnp.zeros((MODEL_DIM,), jnp.float32)
    return (wq, bq, wk, bk, wv, bv, wo, bo)


def prepare_kernel_params(module_params):
    """One-time transform: transpose weights to (in, out), biases to (1, out), fold the
    1/sqrt(head_dim) softmax scale into the q projection, and pre-reshape the output
    projection to (H, head_dim, M) so the head merge fuses into it in-kernel."""
    wq, bq, wk, bk, wv, bv, wo, bo = module_params
    scale = 1.0 / float(np.sqrt(HEAD_DIM))
    wo3 = wo.T.reshape(NUM_HEADS, HEAD_DIM, MODEL_DIM)
    return (wq.T * scale, (bq * scale).reshape(1, -1),
            wk.T, bk.reshape(1, -1),
            wv.T, bv.reshape(1, -1),
            wo3, bo.reshape(1, -1))


def reference(seqs, keys, values, module_params):
    wq, bq, wk, bk, wv, bv, wo, bo = module_params
    q = seqs @ wq.T + bq
    k = keys @ wk.T + bk
    v = values @ wv.T + bv
    n, s, _ = q.shape
    s_kv = k.shape[1]
    q = q.reshape(n, s, NUM_HEADS, HEAD_DIM).transpose(0, 2, 1, 3)
    k = k.reshape(n, s_kv, NUM_KV_HEADS, HEAD_DIM).transpose(0, 2, 1, 3)
    v = v.reshape(n, s_kv, NUM_KV_HEADS, HEAD_DIM).transpose(0, 2, 1, 3)
    if GROUPS > 1:
        k = jnp.repeat(k, GROUPS, axis=1)
        v = jnp.repeat(v, GROUPS, axis=1)
    scores = jnp.einsum('nhsd,nhkd->nhsk', q, k) / np.sqrt(HEAD_DIM)
    p = jax.nn.softmax(scores, axis=-1)
    attn = jnp.einsum('nhsk,nhkd->nhsd', p, v)
    attn = attn.transpose(0, 2, 1, 3).reshape(n, s, -1)
    return attn @ wo.T + bo


if __name__ == "__main__":
    root = jax.random.PRNGKey(0)
    kp, ks, kk, kv = jax.random.split(root, 4)

    module_params = make_module_params(kp)
    kernel_params = prepare_kernel_params(module_params)

    seqs = jax.random.normal(ks, (BATCH, SEQ, MODEL_DIM), jnp.float32)
    keys = jax.random.normal(kk, (BATCH, SEQ_KV, MODEL_DIM), jnp.float32)
    values = jax.random.normal(kv, (BATCH, SEQ_KV, MODEL_DIM), jnp.float32)

    out = jax.block_until_ready(multihead_attention(seqs, keys, values, kernel_params))
    ref = jax.block_until_ready(reference(seqs, keys, values, module_params))

    # approx=True softmax reciprocal => slightly looser tolerance than pure-f32.
    np.testing.assert_allclose(np.asarray(out), np.asarray(ref), rtol=2e-2, atol=2e-3)

    print("KERNEL_OK")
</pallas_src>

<mosaic_0001>
module attributes {stable_mosaic.version = 11 : i64} {
  func.func @_linear_kernel(%arg0: i32, %arg1: memref<16x32xf32, #tpu.memory_space<vmem>>, %arg2: memref<32x32xf32, #tpu.memory_space<vmem>>, %arg3: memref<1x32xf32, #tpu.memory_space<vmem>>, %arg4: memref<16x32xf32, #tpu.memory_space<vmem>>) attributes {dimension_semantics = [#tpu.dimension_semantics<parallel>], iteration_bounds = array<i64: 1>, scalar_prefetch = 0 : i64, scratch_operands = 0 : i64, tpu.core_type = #tpu.core_type<tc>, window_params = [{transform_indices = @transform_0, window_bounds = array<i64: 16, 32>}, {pipeline_mode = #tpu.pipeline_mode<synchronous>, transform_indices = @transform_1, window_bounds = array<i64: 32, 32>}, {pipeline_mode = #tpu.pipeline_mode<synchronous>, transform_indices = @transform_2, window_bounds = array<i64: 1, 32>}, {transform_indices = @transform_3, window_bounds = array<i64: 16, 32>}]} {
    %c0 = arith.constant 0 : index
    %c0_0 = arith.constant 0 : index
    %0 = vector.load %arg1[%c0, %c0_0] : memref<16x32xf32, #tpu.memory_space<vmem>>, vector<16x32xf32>
    %c0_1 = arith.constant 0 : index
    %c0_2 = arith.constant 0 : index
    %1 = vector.load %arg2[%c0_1, %c0_2] : memref<32x32xf32, #tpu.memory_space<vmem>>, vector<32x32xf32>
    %cst = arith.constant dense<0.000000e+00> : vector<16x32xf32>
    %2 = tpu.matmul %0, %1, %cst {dimension_numbers = #tpu.dot_dimension_numbers<[1], [0], [0], [1], [0, 0, 1, 1], [], []>} : vector<16x32xf32>, vector<32x32xf32>, vector<16x32xf32> -> vector<16x32xf32>
    %c0_3 = arith.constant 0 : index
    %c0_4 = arith.constant 0 : index
    %3 = vector.load %arg3[%c0_3, %c0_4] : memref<1x32xf32, #tpu.memory_space<vmem>>, vector<1x32xf32>
    %4 = vector.broadcast %3 : vector<1x32xf32> to vector<16x32xf32>
    %5 = arith.addf %2, %4 : vector<16x32xf32>
    %c0_5 = arith.constant 0 : index
    %c0_6 = arith.constant 0 : index
    %6 = vector.load %arg4[%c0_5, %c0_6] : memref<16x32xf32, #tpu.memory_space<vmem>>, vector<16x32xf32>
    tpu.vector_store %arg4[%c0_5, %c0_6], %5 {strides = array<i32>} : memref<16x32xf32, #tpu.memory_space<vmem>>, vector<16x32xf32>,
    return
  }
  func.func @transform_0(%arg0: i32) -> (i32, i32) {
    %c0_i32 = arith.constant 0 : i32
    %c0_i32_0 = arith.constant 0 : i32
    return %arg0, %c0_i32 : i32, i32
  }
  func.func @transform_1(%arg0: i32) -> (i32, i32) {
    %c0_i32 = arith.constant 0 : i32
    %c0_i32_0 = arith.constant 0 : i32
    %c0_i32_1 = arith.constant 0 : i32
    return %c0_i32, %c0_i32_0 : i32, i32
  }
  func.func @transform_2(%arg0: i32) -> (i32, i32) {
    %c0_i32 = arith.constant 0 : i32
    %c0_i32_0 = arith.constant 0 : i32
    %c0_i32_1 = arith.constant 0 : i32
    return %c0_i32, %c0_i32_0 : i32, i32
  }
  func.func @transform_3(%arg0: i32) -> (i32, i32) {
    %c0_i32 = arith.constant 0 : i32
    %c0_i32_0 = arith.constant 0 : i32
    return %arg0, %c0_i32 : i32, i32
  }
}

</mosaic_0001>

<llo_original>
// kernel: tpu_custom_call.1
$region0: #{tpu_custom_call.1}
  #allocation0 [shape = 'u32[]', space=smem, size = 0x4, offset = 0x4, fixed_abs, tag = 'smem constant byte address 0x4 - core index']
  #allocation1 [shape = 'u32[144,128]{1,0:T(1,128)}', space=vmem, size = 0x12000, scoped, tag = 'internal scratch']
  %s0 = inlined_call_operand.hbm [shape: f32[16,32], index: 0, kind: input, shape index: {}]
  %s1 = inlined_call_operand.hbm [shape: f32[32,32], index: 1, kind: input, shape index: {}]
  %s2 = inlined_call_operand.vmem [shape: f32[1,32], index: 2, kind: input, shape index: {}]
  %s3 = inlined_call_operand.hbm [shape: f32[16,32], index: 3, kind: output, shape index: {}]
  %s4 = sld [smem:[#allocation0]]
  $region30: #{tpu_custom_call.1} parent=0
    _
  %s6 = ssub.s32 1, %s4
  %s7 = scalar_select 0, %s6, %s4
  $region1: #{tpu_custom_call.1} parent=0
    #allocation2 [shape = 'u8[8192]{0}', space=vmem, size = 0x2000, scoped, tag = 'input window, operand 0, single buffered']
    #allocation3 [shape = 's32[1]{0}', space=sflag, size = 0x4, scoped, tag = 'scoped memory for tpu_custom_call.1']
    #allocation4 [shape = 's32[1]{0}', space=sflag, size = 0x4, scoped, tag = 'scoped memory for tpu_custom_call.1']
    #allocation5 [shape = 'u8[16384]{0}', space=vmem, size = 0x4000, scoped, tag = 'input window, operand 1, single buffered']
    #allocation6 [shape = 's32[1]{0}', space=sflag, size = 0x4, scoped, tag = 'scoped memory for tpu_custom_call.1']
    #allocation7 [shape = 'u8[8192]{0}', space=vmem, size = 0x2000, scoped, tag = 'output window, operand 0, single buffered']
    %8 = vsyncpa [#allocation3], 0
    %9 = vsyncpa [#allocation6], 0
    %10 = vsyncpa [#allocation4], 0
    // Predicated region
    $region2: #{tpu_custom_call.1} parent=1 // pred_check
      _
    $region3: #{tpu_custom_call.1} parent=1 // pred_check_branch
      %12 = sbr.rel (0) target = $region5
    $region4: #{tpu_custom_call.1} parent=1 // pred_region
      %s14 = ssub.s32 256, 256
      %15 = vsyncadd [#allocation3], %s14
      %s16 = sshll.u32 [#allocation2], 4
      %s17 = int_to_ptr.vmem [resolvable:$true] %s16
      %22 = dma.hbm_to_vmem [thread:$0]  %s0, 256, %s17, [#allocation3], 128, 128, 8
    $region5: #{tpu_custom_call.1} parent=1 // pred_fallthru
      _
    // Predicated region
    $region6: #{tpu_custom_call.1} parent=1 // pred_check
      _
    $region7: #{tpu_custom_call.1} parent=1 // pred_check_branch
      %24 = sbr.rel (0) target = $region9
    $region8: #{tpu_custom_call.1} parent=1 // pred_region
      %s26 = ssub.s32 512, 512
      %27 = vsyncadd [#allocation6], %s26
      %s28 = sshll.u32 [#allocation5], 4
      %s29 = int_to_ptr.vmem [resolvable:$true] %s28
      %34 = dma.hbm_to_vmem [thread:$0]  %s1, 512, %s29, [#allocation6], 128, 128, 8
    $region9: #{tpu_custom_call.1} parent=1 // pred_fallthru
      _
    // Predicated region
    $region10: #{tpu_custom_call.1} parent=1 // pred_check
      _
    $region11: #{tpu_custom_call.1} parent=1 // pred_check_branch
      %36 = sbr.rel (0) target = $region13
    $region12: #{tpu_custom_call.1} parent=1 // pred_region
      _
    $region13: #{tpu_custom_call.1} parent=1 // pred_fallthru
      _
    // Predicated region
    $region14: #{tpu_custom_call.1} parent=1 // pred_check
      _
    $region15: #{tpu_custom_call.1} parent=1 // pred_check_branch
      %38 = sbr.rel (0) target = $region17
    $region16: #{tpu_custom_call.1} parent=1 // pred_region
      %39 = dma.done [#allocation3], 256
    $region17: #{tpu_custom_call.1} parent=1 // pred_fallthru
      _
    // Predicated region
    $region18: #{tpu_custom_call.1} parent=1 // pred_check
      _
    $region19: #{tpu_custom_call.1} parent=1 // pred_check_branch
      %41 = sbr.rel (0) target = $region21
    $region20: #{tpu_custom_call.1} parent=1 // pred_region
      %42 = dma.done [#allocation6], 512
    $region21: #{tpu_custom_call.1} parent=1 // pred_fallthru
      _
    %v43 = vld [vmem:[#allocation2] sm:$0xff]
    %v44 = vld [vmem:[#allocation2 + $0x8] sm:$0xff]
    %v45 = vld [vmem:[#allocation5] sm:$0xff]
    %v46 = vld [vmem:[#allocation5 + $0x8] sm:$0xff]
    %v47 = vld [vmem:[#allocation5 + $0x10] sm:$0xff]
    %v48 = vld [vmem:[#allocation5 + $0x18] sm:$0xff]
    %v49 = vld [vmem:[%s2] sm:$0x1]
    %v51 = vlaneseq
    %v52 = vshrl.u32 %v51, 7
    %v53 = vsub.s32 0, %v52
    %v54 = vrot.slane %v49, %v53
    %vm56 = vcmask 261120
    %v58 = vsel %vm56, %v43, 0
    %v61 = vsel %vm56, %v44, 0
    %63 = vmatprep.subr.mxu0 0.0
    %64 = vmatpush1.msra.mxu0 %v45
    %65 = vmatprep.subr.mxu0 0.0
    %66 = vmatpush1.msra.mxu0 %v46
    %67 = vmatprep.subr.mxu0 0.0
    %68 = vmatpush1.msra.mxu0 %v47
    %69 = vmatprep.subr.mxu0 0.0
    %70 = vmatpush1.msra.mxu0 %v48
    %71 = vmatprep.subr.mxu0 0.0
    %72 = vmatpush1.msra.mxu0 0.0
    %73 = vmatprep.subr.mxu0 0.0
    %74 = vmatpush1.msra.mxu0 0.0
    %75 = vmatprep.subr.mxu0 0.0
    %76 = vmatpush1.msra.mxu0 0.0
    %77 = vmatprep.subr.mxu0 0.0
    %78 = vmatpush1.msra.mxu0 0.0
    %79 = vmatprep.subr.mxu0 0.0
    %80 = vmatpush1.msra.mxu0 0.0
    %81 = vmatprep.subr.mxu0 0.0
    %82 = vmatpush1.msra.mxu0 0.0
    %83 = vmatprep.subr.mxu0 0.0
    %84 = vmatpush1.msra.mxu0 0.0
    %85 = vmatprep.subr.mxu0 0.0
    %86 = vmatpush1.msra.mxu0 0.0
    %87 = vmatprep.subr.mxu0 0.0
    %88 = vmatpush1.msra.mxu0 0.0
    %89 = vmatprep.subr.mxu0 0.0
    %90 = vmatpush1.msra.mxu0 0.0
    %91 = vmatprep.subr.mxu0 0.0
    %92 = vmatpush1.msra.mxu0 0.0
    %93 = vmatprep.subr.mxu0 0.0
    %94 = vmatpush1.msra.mxu0 0.0
    %95 = vmatprep.subr.mxu0 0.0
    %96 = vmatpush1.msra.mxu0 0.0
    %97 = vmatprep.subr.mxu0 0.0
    %98 = vmatpush1.msra.mxu0 0.0
    %99 = vmatprep.subr.mxu0 0.0
    %100 = vmatpush1.msra.mxu0 0.0
    %101 = vmatprep.subr.mxu0 0.0
    %102 = vmatpush1.msra.mxu0 0.0
    %103 = vmatprep.subr.mxu0 0.0
    %104 = vmatpush1.msra.mxu0 0.0
    %105 = vmatprep.subr.mxu0 0.0
    %106 = vmatpush1.msra.mxu0 0.0
    %107 = vmatprep.subr.mxu0 0.0
    %108 = vmatpush1.msra.mxu0 0.0
    %109 = vmatprep.subr.mxu0 0.0
    %110 = vmatpush1.msra.mxu0 0.0
    %111 = vmatprep.subr.mxu0 0.0
    %112 = vmatpush1.msra.mxu0 0.0
    %113 = vmatprep.subr.mxu0 0.0
    %114 = vmatpush1.msra.mxu0 0.0
    %115 = vmatprep.subr.mxu0 0.0
    %116 = vmatpush1.msra.mxu0 0.0
    %117 = vmatprep.subr.mxu0 0.0
    %118 = vmatpush1.msra.mxu0 0.0
    %119 = vmatprep.subr.mxu0 0.0
    %120 = vmatpush1.msra.mxu0 0.0
    %121 = vmatprep.subr.mxu0 0.0
    %122 = vmatpush1.msra.mxu0 0.0
    %123 = vmatprep.subr.mxu0 0.0
    %124 = vmatpush1.msra.mxu0 0.0
    %125 = vmatprep.subr.mxu0 0.0
    %126 = vmatpush1.msra.mxu0 0.0
    %127 = vmatprep.mubr.f32.mxu0 0.0
    %128 = vmatmul.mubr.f32.gmra.mrb[0].mxu0 %v58
    %v129 = vpop.f32.mrb[0].mxu0
    %v130 = vadd.f32 %v54, %v129
    %v131 = vpop.f32.mrb[0].mxu0
    %132 = vmatprep.mubr.f32.mxu0 0.0
    %133 = vmatmul.mubr.f32.gmra.mrb[0].mxu0 %v61
    %v134 = vpop.f32.mrb[0].mxu0
    %v135 = vadd.f32 %v54, %v134
    %v136 = vpop.f32.mrb[0].mxu0
    %137 = vdwg.mxu0
    %138 = vst.msk [vmem:[#allocation7] sm:$0xff] %vm56, %v130
    %139 = vst.msk [vmem:[#allocation7 + $0x8] sm:$0xff] %vm56, %v135
    // Predicated region
    $region22: #{tpu_custom_call.1} parent=1 // pred_check
      _
    $region23: #{tpu_custom_call.1} parent=1 // pred_check_branch
      %141 = sbr.rel (0) target = $region25
    $region24: #{tpu_custom_call.1} parent=1 // pred_region
      %s143 = ssub.s32 256, 256
      %144 = vsyncadd [#allocation4], %s143
      %s145 = sshll.u32 [#allocation7], 4
      %s146 = int_to_ptr.vmem [resolvable:$true] %s145
      %151 = dma.vmem_to_hbm [thread:$0]  %s146, 256, %s3, [#allocation4], 128, 128, 8
    $region25: #{tpu_custom_call.1} parent=1 // pred_fallthru
      _
    // Predicated region
    $region26: #{tpu_custom_call.1} parent=1 // pred_check
      _
    $region27: #{tpu_custom_call.1} parent=1 // pred_check_branch
      %153 = sbr.rel (0) target = $region29
    $region28: #{tpu_custom_call.1} parent=1 // pred_region
      %154 = dma.done [#allocation4], 256
    $region29: #{tpu_custom_call.1} parent=1 // pred_fallthru
      _
    %155 = vsyncpa [#allocation3], 1
    %156 = vsyncpa [#allocation6], 1
    %157 = vsyncpa [#allocation4], 1

</llo_original>
